<compile_context>
chip_gen: v7x
topology: tpu7x:2x2x1
jax: 0.10.0
libtpu: 0.0.40
codegen_flags: <defaults>
</compile_context>

<pallas_src>
import functools

import jax
import jax.numpy as jnp
from jax.experimental import pallas as pl
from jax.experimental.pallas import tpu as pltpu

IN_FEATURES = 5                  # per branch
TOTAL_IN = 2 * IN_FEATURES       # 10 = full input feature width
LANE_G = 128                     # batch rows packed per lane-dense group
ROW_WIDTH = LANE_G * TOTAL_IN    # 1280 = lane-dense input row width


def _minitest_kernel(w_ref, b_ref, x_ref, o_ref):
    """Fused forward for one tile of `tg` groups (tg*128 batch rows).

    w_ref: (1280, 128) block-diagonal fused weights (resident in VMEM)
    b_ref: (1, 128)    fused-bias broadcast row     (resident in VMEM)
    x_ref: (tg, 1280)  lane-dense input tile (streamed)
    o_ref: (tg, 128)   lane-dense output tile
    """
    acc = jnp.dot(x_ref[...], w_ref[...], preferred_element_type=jnp.float32)
    o_ref[...] = (acc + b_ref[...]).astype(o_ref.dtype)


def pack_params(w_bnn, b_bnn, w_lin, b_lin):
    """Fuse the two Linear(5,1) layers into a block-diagonal (1280,128) weight
    plus a (1,128) bias row matching the lane-dense (B//128, 1280) input view.

    W[g*10 + k, g] = w_fused[k], so out[r, g] = x[r*128+g, :] @ w_fused + b.
    w_bnn, w_lin: (5, 1) stored as (in, out); b_bnn, b_lin: (1, 1).
    """
    w_fused = jnp.concatenate([w_bnn.reshape(-1), w_lin.reshape(-1)])      # (10,)
    b_fused = (b_bnn + b_lin).reshape(())
    eye_g = jnp.eye(LANE_G, dtype=jnp.float32)                             # (128,128)
    # [g, k, g'] = eye[g, g'] * w_fused[k]  ->  reshape rows to g*10 + k.
    w_bd = (eye_g[:, None, :] * w_fused[None, :, None]).reshape(ROW_WIDTH, LANE_G)
    b_row = jnp.full((1, LANE_G), b_fused, jnp.float32)
    return w_bd, b_row


@functools.partial(jax.jit, static_argnames=("block_g",))
def minitest_forward(x, w_bd, b_row, *, block_g=64):
    """x: (B, 10) f32; w_bd: (1280, 128); b_row: (1, 128). Returns (B, 1) f32.

    block_g = groups of 128 rows per grid step (64 -> 8192 batch rows/step).
    """
    B = x.shape[0]
    n_groups = pl.cdiv(B, LANE_G)
    if n_groups * LANE_G != B:
        # Only needed to make the lane-dense reshape legal; <128 rows of pad.
        x = jnp.pad(x, ((0, n_groups * LANE_G - B), (0, 0)))
    x2d = x.reshape(n_groups, ROW_WIDTH)        # contiguous -> free view

    # Sublane-aligned tile; ragged tail block handled by Pallas (no full pad).
    tg = max(8, min(block_g, ((n_groups + 7) // 8) * 8))
    grid = (pl.cdiv(n_groups, tg),)

    out2d = pl.pallas_call(
        _minitest_kernel,
        out_shape=jax.ShapeDtypeStruct((n_groups, LANE_G), jnp.float32),
        grid_spec=pltpu.PrefetchScalarGridSpec(
            num_scalar_prefetch=0,
            grid=grid,
            in_specs=[
                # Resident params: same block every step -> DMA'd once.
                pl.BlockSpec((ROW_WIDTH, LANE_G), lambda i: (0, 0)),
                pl.BlockSpec((1, LANE_G), lambda i: (0, 0)),
                # Streamed lane-dense input (double-buffered by BlockSpec).
                pl.BlockSpec((tg, ROW_WIDTH), lambda i: (i, 0)),
            ],
            out_specs=pl.BlockSpec((tg, LANE_G), lambda i: (i, 0)),
        ),
        compiler_params=pltpu.CompilerParams(
            dimension_semantics=("parallel",)),      # megacore sharding on v7x
        cost_estimate=pl.CostEstimate(
            flops=2 * TOTAL_IN * n_groups * LANE_G,              # ~20 * B
            transcendentals=0,
            bytes_accessed=(TOTAL_IN + 1) * 4 * n_groups * LANE_G),  # ~44 B/row
    )(w_bd, b_row, x2d)

    # (n_groups, 128) -> (B, 1): contiguous reshape + cheap slice of the tail.
    return out2d.reshape(n_groups * LANE_G, 1)[:B]


if __name__ == "__main__":
    key = jax.random.PRNGKey(0)
    (k_x, k_wmu, k_wrho, k_bmu, k_brho,
     k_eps_w, k_eps_b, k_wlin, k_blin) = jax.random.split(key, 9)

    B = 256
    IN = IN_FEATURES
    OUT = 1

    # Input: last dim 10 so torch.split(x, 5, dim=-1) yields exactly two chunks.
    x = jax.random.normal(k_x, (B, 2 * IN), dtype=jnp.float32)

    # --- Bayesian Linear(5, 1), Reparameterization posterior (JAX glue) -----
    # TODO(synk): bayesian-torch's dnn_to_bnn KL machinery has no Pallas
    # equivalent; the single reparameterized weight sample is drawn here.
    w_mu = 0.0 + 0.1 * jax.random.normal(k_wmu, (IN, OUT), dtype=jnp.float32)
    w_rho = -3.0 + 0.1 * jax.random.normal(k_wrho, (IN, OUT), dtype=jnp.float32)
    b_mu = 0.0 + 0.1 * jax.random.normal(k_bmu, (1, OUT), dtype=jnp.float32)
    b_rho = -3.0 + 0.1 * jax.random.normal(k_brho, (1, OUT), dtype=jnp.float32)
    eps_w = jax.random.normal(k_eps_w, (IN, OUT), dtype=jnp.float32)
    eps_b = jax.random.normal(k_eps_b, (1, OUT), dtype=jnp.float32)
    w_bnn = w_mu + jax.nn.softplus(w_rho) * eps_w          # (5, 1)
    b_bnn = b_mu + jax.nn.softplus(b_rho) * eps_b          # (1, 1)

    # --- layer_one: nn.Linear(5, 1), stored transposed as (in, out) ---------
    bound = 1.0 / jnp.sqrt(jnp.float32(IN))
    w_lin = jax.random.uniform(k_wlin, (IN, OUT), minval=-bound, maxval=bound,
                               dtype=jnp.float32)
    b_lin = jax.random.uniform(k_blin, (1, OUT), minval=-bound, maxval=bound,
                               dtype=jnp.float32)

    w_bd, b_row = pack_params(w_bnn, b_bnn, w_lin, b_lin)
    out = jax.block_until_ready(minitest_forward(x, w_bd, b_row))

    # Pure-JAX reference with the UNfused original math.
    ref = (x[:, :IN] @ w_bnn + b_bnn) + (x[:, IN:] @ w_lin + b_lin)
    assert out.shape == (B, OUT)
    assert jnp.allclose(out, ref, atol=1e-5, rtol=1e-5)

    print("KERNEL_OK")
</pallas_src>

<mosaic_0001>
module attributes {stable_mosaic.version = 11 : i64} {
  func.func @_minitest_kernel(%arg0: i32, %arg1: memref<1280x128xf32, #tpu.memory_space<vmem>>, %arg2: memref<1x128xf32, #tpu.memory_space<vmem>>, %arg3: memref<8x1280xf32, #tpu.memory_space<vmem>>, %arg4: memref<8x128xf32, #tpu.memory_space<vmem>>) attributes {dimension_semantics = [#tpu.dimension_semantics<parallel>], iteration_bounds = array<i64: 1>, scalar_prefetch = 0 : i64, scratch_operands = 0 : i64, tpu.core_type = #tpu.core_type<tc>, window_params = [{pipeline_mode = #tpu.pipeline_mode<synchronous>, transform_indices = @transform_0, window_bounds = array<i64: 1280, 128>}, {pipeline_mode = #tpu.pipeline_mode<synchronous>, transform_indices = @transform_1, window_bounds = array<i64: 1, 128>}, {transform_indices = @transform_2, window_bounds = array<i64: 8, 1280>}, {transform_indices = @transform_3, window_bounds = array<i64: 8, 128>}]} {
    %c0 = arith.constant 0 : index
    %c0_0 = arith.constant 0 : index
    %0 = vector.load %arg3[%c0, %c0_0] : memref<8x1280xf32, #tpu.memory_space<vmem>>, vector<8x1280xf32>
    %c0_1 = arith.constant 0 : index
    %c0_2 = arith.constant 0 : index
    %1 = vector.load %arg1[%c0_1, %c0_2] : memref<1280x128xf32, #tpu.memory_space<vmem>>, vector<1280x128xf32>
    %cst = arith.constant dense<0.000000e+00> : vector<8x128xf32>
    %2 = tpu.matmul %0, %1, %cst {dimension_numbers = #tpu.dot_dimension_numbers<[1], [0], [0], [1], [0, 0, 1, 1], [], []>} : vector<8x1280xf32>, vector<1280x128xf32>, vector<8x128xf32> -> vector<8x128xf32>
    %c0_3 = arith.constant 0 : index
    %c0_4 = arith.constant 0 : index
    %3 = vector.load %arg2[%c0_3, %c0_4] : memref<1x128xf32, #tpu.memory_space<vmem>>, vector<1x128xf32>
    %4 = vector.broadcast %3 : vector<1x128xf32> to vector<8x128xf32>
    %5 = arith.addf %2, %4 : vector<8x128xf32>
    %c0_5 = arith.constant 0 : index
    %c0_6 = arith.constant 0 : index
    %6 = vector.load %arg4[%c0_5, %c0_6] : memref<8x128xf32, #tpu.memory_space<vmem>>, vector<8x128xf32>
    tpu.vector_store %arg4[%c0_5, %c0_6], %5 {strides = array<i32>} : memref<8x128xf32, #tpu.memory_space<vmem>>, vector<8x128xf32>,
    return
  }
  func.func @transform_0(%arg0: i32) -> (i32, i32) {
    %c0_i32 = arith.constant 0 : i32
    %c0_i32_0 = arith.constant 0 : i32
    %c0_i32_1 = arith.constant 0 : i32
    return %c0_i32, %c0_i32_0 : i32, i32
  }
  func.func @transform_1(%arg0: i32) -> (i32, i32) {
    %c0_i32 = arith.constant 0 : i32
    %c0_i32_0 = arith.constant 0 : i32
    %c0_i32_1 = arith.constant 0 : i32
    return %c0_i32, %c0_i32_0 : i32, i32
  }
  func.func @transform_2(%arg0: i32) -> (i32, i32) {
    %c0_i32 = arith.constant 0 : i32
    %c0_i32_0 = arith.constant 0 : i32
    return %arg0, %c0_i32 : i32, i32
  }
  func.func @transform_3(%arg0: i32) -> (i32, i32) {
    %c0_i32 = arith.constant 0 : i32
    %c0_i32_0 = arith.constant 0 : i32
    return %arg0, %c0_i32 : i32, i32
  }
}

</mosaic_0001>

<llo_original>
// kernel: minitest_forward.1
$region0: #{minitest_forward.1}
  #allocation0 [shape = 'u32[]', space=smem, size = 0x4, offset = 0x4, fixed_abs, tag = 'smem constant byte address 0x4 - core index']
  #allocation1 [shape = 'u32[144,128]{1,0:T(1,128)}', space=vmem, size = 0x12000, scoped, tag = 'internal scratch']
  %s0 = inlined_call_operand.hbm [shape: f32[1280,128], index: 0, kind: input, shape index: {}]
  %s1 = inlined_call_operand.vmem [shape: f32[1,128], index: 1, kind: input, shape index: {}]
  %s2 = inlined_call_operand.vmem [shape: f32[2,1280], index: 2, kind: input, shape index: {}]
  %s3 = inlined_call_operand.hbm [shape: f32[2,128], index: 3, kind: output, shape index: {}]
  %s4 = sld [smem:[#allocation0]]
  $region26: #{minitest_forward.1} parent=0
    _
  %s6 = ssub.s32 1, %s4
  %s7 = scalar_select 0, %s6, %s4
  $region1: #{minitest_forward.1} parent=0
    #allocation2 [shape = 'u8[655360]{0}', space=vmem, size = 0xa0000, scoped, tag = 'input window, operand 0, single buffered']
    #allocation3 [shape = 's32[1]{0}', space=sflag, size = 0x4, scoped, tag = 'scoped memory for minitest_forward.1']
    #allocation4 [shape = 's32[1]{0}', space=sflag, size = 0x4, scoped, tag = 'scoped memory for minitest_forward.1']
    #allocation5 [shape = 'u8[4096]{0}', space=vmem, size = 0x1000, scoped, tag = 'output window, operand 0, single buffered']
    %8 = vsyncpa [#allocation3], 0
    %9 = vsyncpa [#allocation4], 0
    // Predicated region
    $region2: #{minitest_forward.1} parent=1 // pred_check
      _
    $region3: #{minitest_forward.1} parent=1 // pred_check_branch
      %11 = sbr.rel (0) target = $region5
    $region4: #{minitest_forward.1} parent=1 // pred_region
      %s13 = ssub.s32 20480, 20480
      %14 = vsyncadd [#allocation3], %s13
      %s15 = sshll.u32 [#allocation2], 4
      %s16 = int_to_ptr.vmem [resolvable:$true] %s15
      %21 = dma.hbm_to_vmem [thread:$0]  %s0, 20480, %s16, [#allocation3], 128, 128, 8
    $region5: #{minitest_forward.1} parent=1 // pred_fallthru
      _
    // Predicated region
    $region6: #{minitest_forward.1} parent=1 // pred_check
      _
    $region7: #{minitest_forward.1} parent=1 // pred_check_branch
      %23 = sbr.rel (0) target = $region9
    $region8: #{minitest_forward.1} parent=1 // pred_region
      _
    $region9: #{minitest_forward.1} parent=1 // pred_fallthru
      _
    // Predicated region
    $region10: #{minitest_forward.1} parent=1 // pred_check
      _
    $region11: #{minitest_forward.1} parent=1 // pred_check_branch
      %25 = sbr.rel (0) target = $region13
    $region12: #{minitest_forward.1} parent=1 // pred_region
      _
    $region13: #{minitest_forward.1} parent=1 // pred_fallthru
      _
    // Predicated region
    $region14: #{minitest_forward.1} parent=1 // pred_check
      _
    $region15: #{minitest_forward.1} parent=1 // pred_check_branch
      %27 = sbr.rel (0) target = $region17
    $region16: #{minitest_forward.1} parent=1 // pred_region
      %28 = dma.done [#allocation3], 20480
    $region17: #{minitest_forward.1} parent=1 // pred_fallthru
      _
    %v29 = vld [vmem:[%s2] sm:$0xff]
    %v30 = vld [vmem:[%s2 + $0x8] sm:$0xff]
    %v31 = vld [vmem:[%s2 + $0x10] sm:$0xf]
    %v32 = vld [vmem:[%s2 + $0x14] sm:$0xff]
    %v33 = vld [vmem:[%s2 + $0x1c] sm:$0xff]
    %v34 = vld [vmem:[%s2 + $0x24] sm:$0xf]
    %v35 = vld [vmem:[%s2 + $0x28] sm:$0xff]
    %v36 = vld [vmem:[%s2 + $0x30] sm:$0xff]
    %v37 = vld [vmem:[%s2 + $0x38] sm:$0xf]
    %v38 = vld [vmem:[%s2 + $0x3c] sm:$0xff]
    %v39 = vld [vmem:[%s2 + $0x44] sm:$0xff]
    %v40 = vld [vmem:[%s2 + $0x4c] sm:$0xf]
    %v41 = vld [vmem:[#allocation2] sm:$0xff]
    %v42 = vld [vmem:[#allocation2 + $0x8] sm:$0xff]
    %v43 = vld [vmem:[#allocation2 + $0x10] sm:$0xff]
    %v44 = vld [vmem:[#allocation2 + $0x18] sm:$0xff]
    %v45 = vld [vmem:[#allocation2 + $0x20] sm:$0xff]
    %v46 = vld [vmem:[#allocation2 + $0x28] sm:$0xff]
    %v47 = vld [vmem:[#allocation2 + $0x30] sm:$0xff]
    %v48 = vld [vmem:[#allocation2 + $0x38] sm:$0xff]
    %v49 = vld [vmem:[#allocation2 + $0x40] sm:$0xff]
    %v50 = vld [vmem:[#allocation2 + $0x48] sm:$0xff]
    %v51 = vld [vmem:[#allocation2 + $0x50] sm:$0xff]
    %v52 = vld [vmem:[#allocation2 + $0x58] sm:$0xff]
    %v53 = vld [vmem:[#allocation2 + $0x60] sm:$0xff]
    %v54 = vld [vmem:[#allocation2 + $0x68] sm:$0xff]
    %v55 = vld [vmem:[#allocation2 + $0x70] sm:$0xff]
    %v56 = vld [vmem:[#allocation2 + $0x78] sm:$0xff]
    %v57 = vld [vmem:[#allocation2 + $0x80] sm:$0xff]
    %v58 = vld [vmem:[#allocation2 + $0x88] sm:$0xff]
    %v59 = vld [vmem:[#allocation2 + $0x90] sm:$0xff]
    %v60 = vld [vmem:[#allocation2 + $0x98] sm:$0xff]
    %v61 = vld [vmem:[#allocation2 + $0xa0] sm:$0xff]
    %v62 = vld [vmem:[#allocation2 + $0xa8] sm:$0xff]
    %v63 = vld [vmem:[#allocation2 + $0xb0] sm:$0xff]
    %v64 = vld [vmem:[#allocation2 + $0xb8] sm:$0xff]
    %v65 = vld [vmem:[#allocation2 + $0xc0] sm:$0xff]
    %v66 = vld [vmem:[#allocation2 + $0xc8] sm:$0xff]
    %v67 = vld [vmem:[#allocation2 + $0xd0] sm:$0xff]
    %v68 = vld [vmem:[#allocation2 + $0xd8] sm:$0xff]
    %v69 = vld [vmem:[#allocation2 + $0xe0] sm:$0xff]
    %v70 = vld [vmem:[#allocation2 + $0xe8] sm:$0xff]
    %v71 = vld [vmem:[#allocation2 + $0xf0] sm:$0xff]
    %v72 = vld [vmem:[#allocation2 + $0xf8] sm:$0xff]
    %v73 = vld [vmem:[#allocation2 + $0x100] sm:$0xff]
    %v74 = vld [vmem:[#allocation2 + $0x108] sm:$0xff]
    %v75 = vld [vmem:[#allocation2 + $0x110] sm:$0xff]
    %v76 = vld [vmem:[#allocation2 + $0x118] sm:$0xff]
    %v77 = vld [vmem:[#allocation2 + $0x120] sm:$0xff]
    %v78 = vld [vmem:[#allocation2 + $0x128] sm:$0xff]
    %v79 = vld [vmem:[#allocation2 + $0x130] sm:$0xff]
    %v80 = vld [vmem:[#allocation2 + $0x138] sm:$0xff]
    %v81 = vld [vmem:[#allocation2 + $0x140] sm:$0xff]
    %v82 = vld [vmem:[#allocation2 + $0x148] sm:$0xff]
    %v83 = vld [vmem:[#allocation2 + $0x150] sm:$0xff]
    %v84 = vld [vmem:[#allocation2 + $0x158] sm:$0xff]
    %v85 = vld [vmem:[#allocation2 + $0x160] sm:$0xff]
    %v86 = vld [vmem:[#allocation2 + $0x168] sm:$0xff]
    %v87 = vld [vmem:[#allocation2 + $0x170] sm:$0xff]
    %v88 = vld [vmem:[#allocation2 + $0x178] sm:$0xff]
    %v89 = vld [vmem:[#allocation2 + $0x180] sm:$0xff]
    %v90 = vld [vmem:[#allocation2 + $0x188] sm:$0xff]
    %v91 = vld [vmem:[#allocation2 + $0x190] sm:$0xff]
    %v92 = vld [vmem:[#allocation2 + $0x198] sm:$0xff]
    %v93 = vld [vmem:[#allocation2 + $0x1a0] sm:$0xff]
    %v94 = vld [vmem:[#allocation2 + $0x1a8] sm:$0xff]
    %v95 = vld [vmem:[#allocation2 + $0x1b0] sm:$0xff]
    %v96 = vld [vmem:[#allocation2 + $0x1b8] sm:$0xff]
    %v97 = vld [vmem:[#allocation2 + $0x1c0] sm:$0xff]
    %v98 = vld [vmem:[#allocation2 + $0x1c8] sm:$0xff]
    %v99 = vld [vmem:[#allocation2 + $0x1d0] sm:$0xff]
    %v100 = vld [vmem:[#allocation2 + $0x1d8] sm:$0xff]
    %v101 = vld [vmem:[#allocation2 + $0x1e0] sm:$0xff]
    %v102 = vld [vmem:[#allocation2 + $0x1e8] sm:$0xff]
    %v103 = vld [vmem:[#allocation2 + $0x1f0] sm:$0xff]
    %v104 = vld [vmem:[#allocation2 + $0x1f8] sm:$0xff]
    %v105 = vld [vmem:[#allocation2 + $0x200] sm:$0xff]
    %v106 = vld [vmem:[#allocation2 + $0x208] sm:$0xff]
    %v107 = vld [vmem:[#allocation2 + $0x210] sm:$0xff]
    %v108 = vld [vmem:[#allocation2 + $0x218] sm:$0xff]
    %v109 = vld [vmem:[#allocation2 + $0x220] sm:$0xff]
    %v110 = vld [vmem:[#allocation2 + $0x228] sm:$0xff]
    %v111 = vld [vmem:[#allocation2 + $0x230] sm:$0xff]
    %v112 = vld [vmem:[#allocation2 + $0x238] sm:$0xff]
    %v113 = vld [vmem:[#allocation2 + $0x240] sm:$0xff]
    %v114 = vld [vmem:[#allocation2 + $0x248] sm:$0xff]
    %v115 = vld [vmem:[#allocation2 + $0x250] sm:$0xff]
    %v116 = vld [vmem:[#allocation2 + $0x258] sm:$0xff]
    %v117 = vld [vmem:[#allocation2 + $0x260] sm:$0xff]
    %v118 = vld [vmem:[#allocation2 + $0x268] sm:$0xff]
    %v119 = vld [vmem:[#allocation2 + $0x270] sm:$0xff]
    %v120 = vld [vmem:[#allocation2 + $0x278] sm:$0xff]
    %v121 = vld [vmem:[#allocation2 + $0x280] sm:$0xff]
    %v122 = vld [vmem:[#allocation2 + $0x288] sm:$0xff]
    %v123 = vld [vmem:[#allocation2 + $0x290] sm:$0xff]
    %v124 = vld [vmem:[#allocation2 + $0x298] sm:$0xff]
    %v125 = vld [vmem:[#allocation2 + $0x2a0] sm:$0xff]
    %v126 = vld [vmem:[#allocation2 + $0x2a8] sm:$0xff]
    %v127 = vld [vmem:[#allocation2 + $0x2b0] sm:$0xff]
    %v128 = vld [vmem:[#allocation2 + $0x2b8] sm:$0xff]
    %v129 = vld [vmem:[#allocation2 + $0x2c0] sm:$0xff]
    %v130 = vld [vmem:[#allocation2 + $0x2c8] sm:$0xff]
    %v131 = vld [vmem:[#allocation2 + $0x2d0] sm:$0xff]
    %v132 = vld [vmem:[#allocation2 + $0x2d8] sm:$0xff]
    %v133 = vld [vmem:[#allocation2 + $0x2e0] sm:$0xff]
    %v134 = vld [vmem:[#allocation2 + $0x2e8] sm:$0xff]
    %v135 = vld [vmem:[#allocation2 + $0x2f0] sm:$0xff]
    %v136 = vld [vmem:[#allocation2 + $0x2f8] sm:$0xff]
    %v137 = vld [vmem:[#allocation2 + $0x300] sm:$0xff]
    %v138 = vld [vmem:[#allocation2 + $0x308] sm:$0xff]
    %v139 = vld [vmem:[#allocation2 + $0x310] sm:$0xff]
    %v140 = vld [vmem:[#allocation2 + $0x318] sm:$0xff]
    %v141 = vld [vmem:[#allocation2 + $0x320] sm:$0xff]
    %v142 = vld [vmem:[#allocation2 + $0x328] sm:$0xff]
    %v143 = vld [vmem:[#allocation2 + $0x330] sm:$0xff]
    %v144 = vld [vmem:[#allocation2 + $0x338] sm:$0xff]
    %v145 = vld [vmem:[#allocation2 + $0x340] sm:$0xff]
    %v146 = vld [vmem:[#allocation2 + $0x348] sm:$0xff]
    %v147 = vld [vmem:[#allocation2 + $0x350] sm:$0xff]
    %v148 = vld [vmem:[#allocation2 + $0x358] sm:$0xff]
    %v149 = vld [vmem:[#allocation2 + $0x360] sm:$0xff]
    %v150 = vld [vmem:[#allocation2 + $0x368] sm:$0xff]
    %v151 = vld [vmem:[#allocation2 + $0x370] sm:$0xff]
    %v152 = vld [vmem:[#allocation2 + $0x378] sm:$0xff]
    %v153 = vld [vmem:[#allocation2 + $0x380] sm:$0xff]
    %v154 = vld [vmem:[#allocation2 + $0x388] sm:$0xff]
    %v155 = vld [vmem:[#allocation2 + $0x390] sm:$0xff]
    %v156 = vld [vmem:[#allocation2 + $0x398] sm:$0xff]
    %v157 = vld [vmem:[#allocation2 + $0x3a0] sm:$0xff]
    %v158 = vld [vmem:[#allocation2 + $0x3a8] sm:$0xff]
    %v159 = vld [vmem:[#allocation2 + $0x3b0] sm:$0xff]
    %v160 = vld [vmem:[#allocation2 + $0x3b8] sm:$0xff]
    %v161 = vld [vmem:[#allocation2 + $0x3c0] sm:$0xff]
    %v162 = vld [vmem:[#allocation2 + $0x3c8] sm:$0xff]
    %v163 = vld [vmem:[#allocation2 + $0x3d0] sm:$0xff]
    %v164 = vld [vmem:[#allocation2 + $0x3d8] sm:$0xff]
    %v165 = vld [vmem:[#allocation2 + $0x3e0] sm:$0xff]
    %v166 = vld [vmem:[#allocation2 + $0x3e8] sm:$0xff]
    %v167 = vld [vmem:[#allocation2 + $0x3f0] sm:$0xff]
    %v168 = vld [vmem:[#allocation2 + $0x3f8] sm:$0xff]
    %v169 = vld [vmem:[#allocation2 + $0x400] sm:$0xff]
    %v170 = vld [vmem:[#allocation2 + $0x408] sm:$0xff]
    %v171 = vld [vmem:[#allocation2 + $0x410] sm:$0xff]
    %v172 = vld [vmem:[#allocation2 + $0x418] sm:$0xff]
    %v173 = vld [vmem:[#allocation2 + $0x420] sm:$0xff]
    %v174 = vld [vmem:[#allocation2 + $0x428] sm:$0xff]
    %v175 = vld [vmem:[#allocation2 + $0x430] sm:$0xff]
    %v176 = vld [vmem:[#allocation2 + $0x438] sm:$0xff]
    %v177 = vld [vmem:[#allocation2 + $0x440] sm:$0xff]
    %v178 = vld [vmem:[#allocation2 + $0x448] sm:$0xff]
    %v179 = vld [vmem:[#allocation2 + $0x450] sm:$0xff]
    %v180 = vld [vmem:[#allocation2 + $0x458] sm:$0xff]
    %v181 = vld [vmem:[#allocation2 + $0x460] sm:$0xff]
    %v182 = vld [vmem:[#allocation2 + $0x468] sm:$0xff]
    %v183 = vld [vmem:[#allocation2 + $0x470] sm:$0xff]
    %v184 = vld [vmem:[#allocation2 + $0x478] sm:$0xff]
    %v185 = vld [vmem:[#allocation2 + $0x480] sm:$0xff]
    %v186 = vld [vmem:[#allocation2 + $0x488] sm:$0xff]
    %v187 = vld [vmem:[#allocation2 + $0x490] sm:$0xff]
    %v188 = vld [vmem:[#allocation2 + $0x498] sm:$0xff]
    %v189 = vld [vmem:[#allocation2 + $0x4a0] sm:$0xff]
    %v190 = vld [vmem:[#allocation2 + $0x4a8] sm:$0xff]
    %v191 = vld [vmem:[#allocation2 + $0x4b0] sm:$0xff]
    %v192 = vld [vmem:[#allocation2 + $0x4b8] sm:$0xff]
    %v193 = vld [vmem:[#allocation2 + $0x4c0] sm:$0xff]
    %v194 = vld [vmem:[#allocation2 + $0x4c8] sm:$0xff]
    %v195 = vld [vmem:[#allocation2 + $0x4d0] sm:$0xff]
    %v196 = vld [vmem:[#allocation2 + $0x4d8] sm:$0xff]
    %v197 = vld [vmem:[#allocation2 + $0x4e0] sm:$0xff]
    %v198 = vld [vmem:[#allocation2 + $0x4e8] sm:$0xff]
    %v199 = vld [vmem:[#allocation2 + $0x4f0] sm:$0xff]
    %v200 = vld [vmem:[#allocation2 + $0x4f8] sm:$0xff]
    %v201 = vld [vmem:[%s1] sm:$0x1]
    %v203 = vlaneseq
    %v204 = vshrl.u32 %v203, 7
    %v205 = vsub.s32 0, %v204
    %v206 = vrot.slane %v201, %v205
    %v220 = vcombine.low %v29, %v32
    %v221 = vcombine.high %v29, %v32
    %v222 = vcombine.low %v35, %v38
    %v223 = vcombine.high %v35, %v38
    %v225 = vunpack.c.l.s4 1983009808
    %v226 = vunpack.c.0.s8 %v225
    %v227 = vlaneseq
    %v228 = vshrl.u32 %v227, 7
    %v229 = vsub.s32 %v226, %v228
    %v230 = vrot.slane %v220, %v229
    %v232 = vunpack.c.l.s4 1983009808
    %v233 = vunpack.c.0.s8 %v232
    %v234 = vlaneseq
    %v235 = vshrl.u32 %v234, 7
    %v236 = vsub.s32 %v233, %v235
    %v237 = vrot.slane %v221, %v236
    %v239 = vunpack.c.l.s4 1983009808
    %v240 = vunpack.c.0.s8 %v239
    %v241 = vlaneseq
    %v242 = vshrl.u32 %v241, 7
    %v243 = vsub.s32 %v240, %v242
    %v244 = vrot.slane %v222, %v243
    %v246 = vunpack.c.l.s4 1983009808
    %v247 = vunpack.c.0.s8 %v246
    %v248 = vlaneseq
    %v249 = vshrl.u32 %v248, 7
    %v250 = vsub.s32 %v247, %v249
    %v251 = vrot.slane %v223, %v250
    %v252 = vcombine.low %v230, %v244
    %v253 = vcombine.high %v230, %v244
    %v254 = vcombine.low %v237, %v251
    %v255 = vcombine.high %v237, %v251
    %v256 = vcombine.low %v30, %v33
    %v257 = vcombine.high %v30, %v33
    %v258 = vcombine.low %v36, %v39
    %v259 = vcombine.high %v36, %v39
    %v261 = vunpack.c.l.s4 1983009808
    %v262 = vunpack.c.0.s8 %v261
    %v263 = vlaneseq
    %v264 = vshrl.u32 %v263, 7
    %v265 = vsub.s32 %v262, %v264
    %v266 = vrot.slane %v256, %v265
    %v268 = vunpack.c.l.s4 1983009808
    %v269 = vunpack.c.0.s8 %v268
    %v270 = vlaneseq
    %v271 = vshrl.u32 %v270, 7
    %v272 = vsub.s32 %v269, %v271
    %v273 = vrot.slane %v257, %v272
    %v275 = vunpack.c.l.s4 1983009808
    %v276 = vunpack.c.0.s8 %v275
    %v277 = vlaneseq
    %v278 = vshrl.u32 %v277, 7
    %v279 = vsub.s32 %v276, %v278
    %v280 = vrot.slane %v258, %v279
    %v282 = vunpack.c.l.s4 1983009808
    %v283 = vunpack.c.0.s8 %v282
    %v284 = vlaneseq
    %v285 = vshrl.u32 %v284, 7
    %v286 = vsub.s32 %v283, %v285
    %v287 = vrot.slane %v259, %v286
    %v288 = vcombine.low %v266, %v280
    %v289 = vcombine.high %v266, %v280
    %v290 = vcombine.low %v273, %v287
    %v291 = vcombine.high %v273, %v287
    %v292 = vcombine.low %v31, %v34
    %v293 = vcombine.low %v37, %v40
    %v295 = vunpack.c.l.s4 1983009808
    %v296 = vunpack.c.0.s8 %v295
    %v297 = vlaneseq
    %v298 = vshrl.u32 %v297, 7
    %v299 = vsub.s32 %v296, %v298
    %v300 = vrot.slane %v292, %v299
    %v302 = vunpack.c.l.s4 1983009808
    %v303 = vunpack.c.0.s8 %v302
    %v304 = vlaneseq
    %v305 = vshrl.u32 %v304, 7
    %v306 = vsub.s32 %v303, %v305
    %v307 = vrot.slane %v293, %v306
    %v308 = vcombine.low %v300, %v307
    %v309 = vcombine.high %v300, %v307
    %320 = vmatprep.subr.mxu0 0.0
    %321 = vmatpush1.msra.mxu0 %v41
    %322 = vmatprep.subr.mxu0 0.0
    %323 = vmatpush1.msra.mxu0 %v42
    %324 = vmatprep.subr.mxu0 0.0
    %325 = vmatpush1.msra.mxu0 %v43
    %326 = vmatprep.subr.mxu0 0.0
    %327 = vmatpush1.msra.mxu0 %v44
    %328 = vmatprep.subr.mxu0 0.0
    %329 = vmatpush1.msra.mxu0 %v45
    %330 = vmatprep.subr.mxu0 0.0
    %331 = vmatpush1.msra.mxu0 %v46
    %332 = vmatprep.subr.mxu0 0.0
    %333 = vmatpush1.msra.mxu0 %v47
    %334 = vmatprep.subr.mxu0 0.0
    %335 = vmatpush1.msra.mxu0 %v48
    %336 = vmatprep.subr.mxu0 0.0
    %337 = vmatpush1.msra.mxu0 %v49
    %338 = vmatprep.subr.mxu0 0.0
    %339 = vmatpush1.msra.mxu0 %v50
    %340 = vmatprep.subr.mxu0 0.0
    %341 = vmatpush1.msra.mxu0 %v51
    %342 = vmatprep.subr.mxu0 0.0
    %343 = vmatpush1.msra.mxu0 %v52
    %344 = vmatprep.subr.mxu0 0.0
    %345 = vmatpush1.msra.mxu0 %v53
    %346 = vmatprep.subr.mxu0 0.0
    %347 = vmatpush1.msra.mxu0 %v54
    %348 = vmatprep.subr.mxu0 0.0
    %349 = vmatpush1.msra.mxu0 %v55
    %350 = vmatprep.subr.mxu0 0.0
    %351 = vmatpush1.msra.mxu0 %v56
    %352 = vmatprep.subr.mxu0 0.0
    %353 = vmatpush1.msra.mxu0 %v57
    %354 = vmatprep.subr.mxu0 0.0
    %355 = vmatpush1.msra.mxu0 %v58
    %356 = vmatprep.subr.mxu0 0.0
    %357 = vmatpush1.msra.mxu0 %v59
    %358 = vmatprep.subr.mxu0 0.0
    %359 = vmatpush1.msra.mxu0 %v60
    %360 = vmatprep.subr.mxu0 0.0
    %361 = vmatpush1.msra.mxu0 %v61
    %362 = vmatprep.subr.mxu0 0.0
    %363 = vmatpush1.msra.mxu0 %v62
    %364 = vmatprep.subr.mxu0 0.0
    %365 = vmatpush1.msra.mxu0 %v63
    %366 = vmatprep.subr.mxu0 0.0
    %367 = vmatpush1.msra.mxu0 %v64
    %368 = vmatprep.subr.mxu0 0.0
    %369 = vmatpush1.msra.mxu0 %v65
    %370 = vmatprep.subr.mxu0 0.0
    %371 = vmatpush1.msra.mxu0 %v66
    %372 = vmatprep.subr.mxu0 0.0
    %373 = vmatpush1.msra.mxu0 %v67
    %374 = vmatprep.subr.mxu0 0.0
    %375 = vmatpush1.msra.mxu0 %v68
    %376 = vmatprep.subr.mxu0 0.0
    %377 = vmatpush1.msra.mxu0 %v69
    %378 = vmatprep.subr.mxu0 0.0
    %379 = vmatpush1.msra.mxu0 %v70
    %380 = vmatprep.subr.mxu0 0.0
    %381 = vmatpush1.msra.mxu0 %v71
    %382 = vmatprep.subr.mxu0 0.0
    %383 = vmatpush1.msra.mxu0 %v72
    %384 = vmatprep.mubr.f32.mxu0 %v253
    %385 = vmatmul.mubr.f32.gmra.mrb[0].mxu0 %v252
    %v386 = vpop.f32.mrb[0].mxu0
    %v387 = vadd.f32 %v206, %v386
    %v388 = vpop.f32.mrb[0].mxu0
    %389 = vdwg.mxu0
    %390 = vmatprep.subr.mxu0 0.0
    %391 = vmatpush1.msra.mxu0 %v73
    %392 = vmatprep.subr.mxu0 0.0
    %393 = vmatpush1.msra.mxu0 %v74
    %394 = vmatprep.subr.mxu0 0.0
    %395 = vmatpush1.msra.mxu0 %v75
    %396 = vmatprep.subr.mxu0 0.0
    %397 = vmatpush1.msra.mxu0 %v76
    %398 = vmatprep.subr.mxu0 0.0
    %399 = vmatpush1.msra.mxu0 %v77
    %400 = vmatprep.subr.mxu0 0.0
    %401 = vmatpush1.msra.mxu0 %v78
    %402 = vmatprep.subr.mxu0 0.0
    %403 = vmatpush1.msra.mxu0 %v79
    %404 = vmatprep.subr.mxu0 0.0
    %405 = vmatpush1.msra.mxu0 %v80
    %406 = vmatprep.subr.mxu0 0.0
    %407 = vmatpush1.msra.mxu0 %v81
    %408 = vmatprep.subr.mxu0 0.0
    %409 = vmatpush1.msra.mxu0 %v82
    %410 = vmatprep.subr.mxu0 0.0
    %411 = vmatpush1.msra.mxu0 %v83
    %412 = vmatprep.subr.mxu0 0.0
    %413 = vmatpush1.msra.mxu0 %v84
    %414 = vmatprep.subr.mxu0 0.0
    %415 = vmatpush1.msra.mxu0 %v85
    %416 = vmatprep.subr.mxu0 0.0
    %417 = vmatpush1.msra.mxu0 %v86
    %418 = vmatprep.subr.mxu0 0.0
    %419 = vmatpush1.msra.mxu0 %v87
    %420 = vmatprep.subr.mxu0 0.0
    %421 = vmatpush1.msra.mxu0 %v88
    %422 = vmatprep.subr.mxu0 0.0
    %423 = vmatpush1.msra.mxu0 %v89
    %424 = vmatprep.subr.mxu0 0.0
    %425 = vmatpush1.msra.mxu0 %v90
    %426 = vmatprep.subr.mxu0 0.0
    %427 = vmatpush1.msra.mxu0 %v91
    %428 = vmatprep.subr.mxu0 0.0
    %429 = vmatpush1.msra.mxu0 %v92
    %430 = vmatprep.subr.mxu0 0.0
    %431 = vmatpush1.msra.mxu0 %v93
    %432 = vmatprep.subr.mxu0 0.0
    %433 = vmatpush1.msra.mxu0 %v94
    %434 = vmatprep.subr.mxu0 0.0
    %435 = vmatpush1.msra.mxu0 %v95
    %436 = vmatprep.subr.mxu0 0.0
    %437 = vmatpush1.msra.mxu0 %v96
    %438 = vmatprep.subr.mxu0 0.0
    %439 = vmatpush1.msra.mxu0 %v97
    %440 = vmatprep.subr.mxu0 0.0
    %441 = vmatpush1.msra.mxu0 %v98
    %442 = vmatprep.subr.mxu0 0.0
    %443 = vmatpush1.msra.mxu0 %v99
    %444 = vmatprep.subr.mxu0 0.0
    %445 = vmatpush1.msra.mxu0 %v100
    %446 = vmatprep.subr.mxu0 0.0
    %447 = vmatpush1.msra.mxu0 %v101
    %448 = vmatprep.subr.mxu0 0.0
    %449 = vmatpush1.msra.mxu0 %v102
    %450 = vmatprep.subr.mxu0 0.0
    %451 = vmatpush1.msra.mxu0 %v103
    %452 = vmatprep.subr.mxu0 0.0
    %453 = vmatpush1.msra.mxu0 %v104
    %454 = vmatprep.mubr.f32.mxu0 %v255
    %455 = vmatmul.mubr.f32.gmra.mrb[0].mxu0 %v254
    %v456 = vpop.f32.mrb[0].mxu0
    %v457 = vadd.f32 %v387, %v456
    %v458 = vpop.f32.mrb[0].mxu0
    %459 = vdwg.mxu0
    %460 = vmatprep.subr.mxu0 0.0
    %461 = vmatpush1.msra.mxu0 %v105
    %462 = vmatprep.subr.mxu0 0.0
    %463 = vmatpush1.msra.mxu0 %v106
    %464 = vmatprep.subr.mxu0 0.0
    %465 = vmatpush1.msra.mxu0 %v107
    %466 = vmatprep.subr.mxu0 0.0
    %467 = vmatpush1.msra.mxu0 %v108
    %468 = vmatprep.subr.mxu0 0.0
    %469 = vmatpush1.msra.mxu0 %v109
    %470 = vmatprep.subr.mxu0 0.0
    %471 = vmatpush1.msra.mxu0 %v110
    %472 = vmatprep.subr.mxu0 0.0
    %473 = vmatpush1.msra.mxu0 %v111
    %474 = vmatprep.subr.mxu0 0.0
    %475 = vmatpush1.msra.mxu0 %v112
    %476 = vmatprep.subr.mxu0 0.0
    %477 = vmatpush1.msra.mxu0 %v113
    %478 = vmatprep.subr.mxu0 0.0
    %479 = vmatpush1.msra.mxu0 %v114
    %480 = vmatprep.subr.mxu0 0.0
    %481 = vmatpush1.msra.mxu0 %v115
    %482 = vmatprep.subr.mxu0 0.0
    %483 = vmatpush1.msra.mxu0 %v116
    %484 = vmatprep.subr.mxu0 0.0
    %485 = vmatpush1.msra.mxu0 %v117
    %486 = vmatprep.subr.mxu0 0.0
    %487 = vmatpush1.msra.mxu0 %v118
    %488 = vmatprep.subr.mxu0 0.0
    %489 = vmatpush1.msra.mxu0 %v119
    %490 = vmatprep.subr.mxu0 0.0
    %491 = vmatpush1.msra.mxu0 %v120
    %492 = vmatprep.subr.mxu0 0.0
    %493 = vmatpush1.msra.mxu0 %v121
    %494 = vmatprep.subr.mxu0 0.0
    %495 = vmatpush1.msra.mxu0 %v122
    %496 = vmatprep.subr.mxu0 0.0
    %497 = vmatpush1.msra.mxu0 %v123
    %498 = vmatprep.subr.mxu0 0.0
    %499 = vmatpush1.msra.mxu0 %v124
    %500 = vmatprep.subr.mxu0 0.0
    %501 = vmatpush1.msra.mxu0 %v125
    %502 = vmatprep.subr.mxu0 0.0
    %503 = vmatpush1.msra.mxu0 %v126
    %504 = vmatprep.subr.mxu0 0.0
    %505 = vmatpush1.msra.mxu0 %v127
    %506 = vmatprep.subr.mxu0 0.0
    %507 = vmatpush1.msra.mxu0 %v128
    %508 = vmatprep.subr.mxu0 0.0
    %509 = vmatpush1.msra.mxu0 %v129
    %510 = vmatprep.subr.mxu0 0.0
    %511 = vmatpush1.msra.mxu0 %v130
    %512 = vmatprep.subr.mxu0 0.0
    %513 = vmatpush1.msra.mxu0 %v131
    %514 = vmatprep.subr.mxu0 0.0
    %515 = vmatpush1.msra.mxu0 %v132
    %516 = vmatprep.subr.mxu0 0.0
    %517 = vmatpush1.msra.mxu0 %v133
    %518 = vmatprep.subr.mxu0 0.0
    %519 = vmatpush1.msra.mxu0 %v134
    %520 = vmatprep.subr.mxu0 0.0
    %521 = vmatpush1.msra.mxu0 %v135
    %522 = vmatprep.subr.mxu0 0.0
    %523 = vmatpush1.msra.mxu0 %v136
    %524 = vmatprep.mubr.f32.mxu0 %v289
    %525 = vmatmul.mubr.f32.gmra.mrb[0].mxu0 %v288
    %v526 = vpop.f32.mrb[0].mxu0
    %v527 = vadd.f32 %v457, %v526
    %v528 = vpop.f32.mrb[0].mxu0
    %529 = vdwg.mxu0
    %530 = vmatprep.subr.mxu0 0.0
    %531 = vmatpush1.msra.mxu0 %v137
    %532 = vmatprep.subr.mxu0 0.0
    %533 = vmatpush1.msra.mxu0 %v138
    %534 = vmatprep.subr.mxu0 0.0
    %535 = vmatpush1.msra.mxu0 %v139
    %536 = vmatprep.subr.mxu0 0.0
    %537 = vmatpush1.msra.mxu0 %v140
    %538 = vmatprep.subr.mxu0 0.0
    %539 = vmatpush1.msra.mxu0 %v141
    %540 = vmatprep.subr.mxu0 0.0
    %541 = vmatpush1.msra.mxu0 %v142
    %542 = vmatprep.subr.mxu0 0.0
    %543 = vmatpush1.msra.mxu0 %v143
    %544 = vmatprep.subr.mxu0 0.0
    %545 = vmatpush1.msra.mxu0 %v144
    %546 = vmatprep.subr.mxu0 0.0
    %547 = vmatpush1.msra.mxu0 %v145
    %548 = vmatprep.subr.mxu0 0.0
    %549 = vmatpush1.msra.mxu0 %v146
    %550 = vmatprep.subr.mxu0 0.0
    %551 = vmatpush1.msra.mxu0 %v147
    %552 = vmatprep.subr.mxu0 0.0
    %553 = vmatpush1.msra.mxu0 %v148
    %554 = vmatprep.subr.mxu0 0.0
    %555 = vmatpush1.msra.mxu0 %v149
    %556 = vmatprep.subr.mxu0 0.0
    %557 = vmatpush1.msra.mxu0 %v150
    %558 = vmatprep.subr.mxu0 0.0
    %559 = vmatpush1.msra.mxu0 %v151
    %560 = vmatprep.subr.mxu0 0.0
    %561 = vmatpush1.msra.mxu0 %v152
    %562 = vmatprep.subr.mxu0 0.0
    %563 = vmatpush1.msra.mxu0 %v153
    %564 = vmatprep.subr.mxu0 0.0
    %565 = vmatpush1.msra.mxu0 %v154
    %566 = vmatprep.subr.mxu0 0.0
    %567 = vmatpush1.msra.mxu0 %v155
    %568 = vmatprep.subr.mxu0 0.0
    %569 = vmatpush1.msra.mxu0 %v156
    %570 = vmatprep.subr.mxu0 0.0
    %571 = vmatpush1.msra.mxu0 %v157
    %572 = vmatprep.subr.mxu0 0.0
    %573 = vmatpush1.msra.mxu0 %v158
    %574 = vmatprep.subr.mxu0 0.0
    %575 = vmatpush1.msra.mxu0 %v159
    %576 = vmatprep.subr.mxu0 0.0
    %577 = vmatpush1.msra.mxu0 %v160
    %578 = vmatprep.subr.mxu0 0.0
    %579 = vmatpush1.msra.mxu0 %v161
    %580 = vmatprep.subr.mxu0 0.0
    %581 = vmatpush1.msra.mxu0 %v162
    %582 = vmatprep.subr.mxu0 0.0
    %583 = vmatpush1.msra.mxu0 %v163
    %584 = vmatprep.subr.mxu0 0.0
    %585 = vmatpush1.msra.mxu0 %v164
    %586 = vmatprep.subr.mxu0 0.0
    %587 = vmatpush1.msra.mxu0 %v165
    %588 = vmatprep.subr.mxu0 0.0
    %589 = vmatpush1.msra.mxu0 %v166
    %590 = vmatprep.subr.mxu0 0.0
    %591 = vmatpush1.msra.mxu0 %v167
    %592 = vmatprep.subr.mxu0 0.0
    %593 = vmatpush1.msra.mxu0 %v168
    %594 = vmatprep.mubr.f32.mxu0 %v291
    %595 = vmatmul.mubr.f32.gmra.mrb[0].mxu0 %v290
    %v596 = vpop.f32.mrb[0].mxu0
    %v597 = vadd.f32 %v527, %v596
    %v598 = vpop.f32.mrb[0].mxu0
    %599 = vdwg.mxu0
    %600 = vmatprep.subr.mxu0 0.0
    %601 = vmatpush1.msra.mxu0 %v169
    %602 = vmatprep.subr.mxu0 0.0
    %603 = vmatpush1.msra.mxu0 %v170
    %604 = vmatprep.subr.mxu0 0.0
    %605 = vmatpush1.msra.mxu0 %v171
    %606 = vmatprep.subr.mxu0 0.0
    %607 = vmatpush1.msra.mxu0 %v172
    %608 = vmatprep.subr.mxu0 0.0
    %609 = vmatpush1.msra.mxu0 %v173
    %610 = vmatprep.subr.mxu0 0.0
    %611 = vmatpush1.msra.mxu0 %v174
    %612 = vmatprep.subr.mxu0 0.0
    %613 = vmatpush1.msra.mxu0 %v175
    %614 = vmatprep.subr.mxu0 0.0
    %615 = vmatpush1.msra.mxu0 %v176
    %616 = vmatprep.subr.mxu0 0.0
    %617 = vmatpush1.msra.mxu0 %v177
    %618 = vmatprep.subr.mxu0 0.0
    %619 = vmatpush1.msra.mxu0 %v178
    %620 = vmatprep.subr.mxu0 0.0
    %621 = vmatpush1.msra.mxu0 %v179
    %622 = vmatprep.subr.mxu0 0.0
    %623 = vmatpush1.msra.mxu0 %v180
    %624 = vmatprep.subr.mxu0 0.0
    %625 = vmatpush1.msra.mxu0 %v181
    %626 = vmatprep.subr.mxu0 0.0
    %627 = vmatpush1.msra.mxu0 %v182
    %628 = vmatprep.subr.mxu0 0.0
    %629 = vmatpush1.msra.mxu0 %v183
    %630 = vmatprep.subr.mxu0 0.0
    %631 = vmatpush1.msra.mxu0 %v184
    %632 = vmatprep.subr.mxu0 0.0
    %633 = vmatpush1.msra.mxu0 %v185
    %634 = vmatprep.subr.mxu0 0.0
    %635 = vmatpush1.msra.mxu0 %v186
    %636 = vmatprep.subr.mxu0 0.0
    %637 = vmatpush1.msra.mxu0 %v187
    %638 = vmatprep.subr.mxu0 0.0
    %639 = vmatpush1.msra.mxu0 %v188
    %640 = vmatprep.subr.mxu0 0.0
    %641 = vmatpush1.msra.mxu0 %v189
    %642 = vmatprep.subr.mxu0 0.0
    %643 = vmatpush1.msra.mxu0 %v190
    %644 = vmatprep.subr.mxu0 0.0
    %645 = vmatpush1.msra.mxu0 %v191
    %646 = vmatprep.subr.mxu0 0.0
    %647 = vmatpush1.msra.mxu0 %v192
    %648 = vmatprep.subr.mxu0 0.0
    %649 = vmatpush1.msra.mxu0 %v193
    %650 = vmatprep.subr.mxu0 0.0
    %651 = vmatpush1.msra.mxu0 %v194
    %652 = vmatprep.subr.mxu0 0.0
    %653 = vmatpush1.msra.mxu0 %v195
    %654 = vmatprep.subr.mxu0 0.0
    %655 = vmatpush1.msra.mxu0 %v196
    %656 = vmatprep.subr.mxu0 0.0
    %657 = vmatpush1.msra.mxu0 %v197
    %658 = vmatprep.subr.mxu0 0.0
    %659 = vmatpush1.msra.mxu0 %v198
    %660 = vmatprep.subr.mxu0 0.0
    %661 = vmatpush1.msra.mxu0 %v199
    %662 = vmatprep.subr.mxu0 0.0
    %663 = vmatpush1.msra.mxu0 %v200
    %664 = vmatprep.mubr.f32.mxu0 %v309
    %665 = vmatmul.mubr.f32.gmra.mrb[0].mxu0 %v308
    %v666 = vpop.f32.mrb[0].mxu0
    %v667 = vadd.f32 %v597, %v666
    %v668 = vpop.f32.mrb[0].mxu0
    %669 = vdwg.mxu0
    %670 = vst [vmem:[#allocation5] sm:$0xff] %v667
    // Predicated region
    $region18: #{minitest_forward.1} parent=1 // pred_check
      _
    $region19: #{minitest_forward.1} parent=1 // pred_check_branch
      %672 = sbr.rel (0) target = $region21
    $region20: #{minitest_forward.1} parent=1 // pred_region
      %s674 = ssub.s32 128, 32
      %675 = vsyncadd [#allocation4], %s674
      %s676 = sshll.u32 [#allocation5], 4
      %s677 = int_to_ptr.vmem [resolvable:$true] %s676
      %682 = dma.vmem_to_hbm [thread:$0]  %s677, 32, %s3, [#allocation4], 32, 32, 2
    $region21: #{minitest_forward.1} parent=1 // pred_fallthru
      _
    // Predicated region
    $region22: #{minitest_forward.1} parent=1 // pred_check
      _
    $region23: #{minitest_forward.1} parent=1 // pred_check_branch
      %684 = sbr.rel (0) target = $region25
    $region24: #{minitest_forward.1} parent=1 // pred_region
      %685 = dma.done [#allocation4], 128
    $region25: #{minitest_forward.1} parent=1 // pred_fallthru
      _
    %686 = vsyncpa [#allocation3], 1
    %687 = vsyncpa [#allocation4], 1

</llo_original>
